<compile_context>
chip_gen: v5e
topology: v5e:2x2
jax: 0.10.0
libtpu: 0.0.40
codegen_flags: <defaults>
</compile_context>

<pallas_src>
import functools
import numpy as np

import jax
import jax.numpy as jnp
from jax import lax
from jax.experimental import pallas as pl
from jax.experimental.pallas import tpu as pltpu


def _round_up(x, m):
    return (x + m - 1) // m * m


@functools.lru_cache(maxsize=None)
def _vmem_limit():
    """Conservative per-kernel VMEM budget (v7x has only 64 MiB physical)."""
    try:
        cap = int(pltpu.get_tpu_info().vmem_capacity_bytes)
    except Exception:
        cap = 64 * 1024 * 1024
    return int(min(cap * 3 // 4, 96 * 1024 * 1024))


def _probe_copy_kernel(x_ref, o_ref):
    o_ref[...] = x_ref[...]


@functools.lru_cache(maxsize=None)
def _weight_spec_kwargs():
    """{'pipeline_mode': pl.Buffered(1)} if supported, else {}.

    Constant-index weights are fetched once; the default second pipeline buffer
    is never refilled, so reclaiming it matters on v7x's 64 MiB VMEM.
    """
    try:
        kw = {"pipeline_mode": pl.Buffered(1)}
        out = pl.pallas_call(
            _probe_copy_kernel,
            grid=(1,),
            in_specs=[pl.BlockSpec((8, 128), lambda i: (0, 0), **kw)],
            out_specs=pl.BlockSpec((8, 128), lambda i: (0, 0)),
            out_shape=jax.ShapeDtypeStruct((8, 128), jnp.float32),
        )(jnp.zeros((8, 128), jnp.float32))
        jax.block_until_ready(out)
        return kw
    except Exception:
        return {}


def _pick_rows(n_rows, bytes_per_row, budget, cap=512):
    """Largest row tile (multiple of 8, <= cap) whose pipelined buffers fit."""
    nt = max(8, min(cap, n_rows))
    nt -= nt % 8
    while nt > 8 and nt * bytes_per_row > budget:
        nt //= 2
        nt -= nt % 8
    return max(8, nt)


# ----------------------------------------------------------------------------
# Kernel 1: hoisted input GEMM  P = x @ [Wih_f | Wih_b]  (bias added later, f32)
# Output is bf16, split into per-direction contiguous slabs (2, rows, 4H).
# ----------------------------------------------------------------------------
def pregemm_kernel(x_ref, w_ref, o_ref, *, G4):
    x = x_ref[...].astype(jnp.bfloat16)
    p = jnp.dot(x, w_ref[...], preferred_element_type=jnp.float32)
    o_ref[0] = p[:, :G4].astype(o_ref.dtype)          # forward gates
    o_ref[1] = p[:, G4:].astype(o_ref.dtype)          # backward gates


def run_pregemm(x_flat, wih, H):
    N, D = x_flat.shape
    G = wih.shape[1]                                   # 8H
    G4 = 4 * H
    vmem = _vmem_limit()
    budget = vmem - D * G * 2 - (4 << 20)              # resident weight + slack
    nt = _pick_rows(N, 2 * (4 * D + 2 * G), budget)    # 2 bufs x (in + bf16 out)
    return pl.pallas_call(
        functools.partial(pregemm_kernel, G4=G4),
        grid=(pl.cdiv(N, nt),),
        in_specs=[pl.BlockSpec((nt, D), lambda i: (i, 0)),
                  pl.BlockSpec((D, G), lambda i: (0, 0), **_weight_spec_kwargs())],
        out_specs=pl.BlockSpec((2, nt, G4), lambda i: (0, i, 0)),
        out_shape=jax.ShapeDtypeStruct((2, N, G4), jnp.bfloat16),
        compiler_params=pltpu.CompilerParams(
            dimension_semantics=("parallel",),
            vmem_limit_bytes=vmem),
    )(x_flat, wih)


# ----------------------------------------------------------------------------
# Kernel 2: masked LSTM recurrence.  Grid = (direction, time-chunk):
#   direction axis is "parallel" (fwd/bwd split across TensorCores on v7x),
#   chunk axis is "arbitrary" (h/c carried in VMEM scratch across chunks).
# The backward direction walks chunks (and steps within a chunk) in reverse.
# ----------------------------------------------------------------------------
def bilstm_kernel(lens_ref, p_ref, whh_ref, bias_ref,
                  y_ref, hN_ref, cN_ref, h_sc, c_sc, *, H, Tc):
    d = pl.program_id(0)                  # 0 = forward, 1 = backward
    ci = pl.program_id(1)                 # chunk index in processing order
    nc = pl.num_programs(1)

    @pl.when(ci == 0)
    def _():
        h_sc[...] = jnp.zeros_like(h_sc)
        c_sc[...] = jnp.zeros_like(c_sc)

    lens = lens_ref[...]                  # (Bp, 1) int32
    whh = whh_ref[...]                    # (H, 4H) bf16
    bias = bias_ref[...]                  # (1, 4H) f32

    is_fwd = d == 0
    chunk_t0 = jnp.where(is_fwd, ci, nc - 1 - ci) * Tc     # global time of slot 0

    def step(s, carry):
        # si: slot within the chunk in storage (global-time) order
        si = jnp.where(is_fwd, s, Tc - 1 - s)
        t = chunk_t0 + si

        h_prev = h_sc[...]
        c_prev = c_sc[...]

        # gates = x@Wih (bf16, precomputed) + bias (f32) + h@Whh (MXU, f32 acc)
        g = p_ref[si].astype(jnp.float32) + bias
        g = g + jnp.dot(h_prev.astype(jnp.bfloat16), whh,
                        preferred_element_type=jnp.float32)     # (Bp, 4H)

        i_g = jax.nn.sigmoid(g[:, 0 * H:1 * H])     # PyTorch gate order i,f,g,o
        f_g = jax.nn.sigmoid(g[:, 1 * H:2 * H])
        g_g = jnp.tanh(g[:, 2 * H:3 * H])
        o_g = jax.nn.sigmoid(g[:, 3 * H:4 * H])
        c_new = f_g * c_prev + i_g * g_g
        h_new = o_g * jnp.tanh(c_new)

        m = t < lens                                 # packed-sequence mask
        h_sc[...] = jnp.where(m, h_new, h_prev)
        c_sc[...] = jnp.where(m, c_new, c_prev)
        y_ref[si] = jnp.where(m, h_new, 0.0).astype(y_ref.dtype)
        return carry

    unroll = 2 if H <= 512 else 1                    # avoid vreg spills at large H
    lax.fori_loop(0, Tc, step, 0, unroll=unroll)

    @pl.when(ci == nc - 1)
    def _():
        hN_ref[...] = h_sc[...]
        cN_ref[...] = c_sc[...]


def run_bilstm(p_gates, lens2d, whh, bias, H, Tc):
    """p_gates: (2, T_pad, Bp, 4H) bf16; whh: (2, H, 4H) bf16; bias: (2, 1, 4H)."""
    _, T_pad, Bp, _ = p_gates.shape
    nc = T_pad // Tc
    wkw = _weight_spec_kwargs()
    y, hN, cN = pl.pallas_call(
        functools.partial(bilstm_kernel, H=H, Tc=Tc),
        grid=(2, nc),
        in_specs=[
            pl.BlockSpec((Bp, 1), lambda d, i: (0, 0)),                       # lens
            pl.BlockSpec((None, Tc, Bp, 4 * H),                               # P
                         lambda d, i: (d, i + d * (nc - 1 - 2 * i), 0, 0)),
            pl.BlockSpec((None, H, 4 * H), lambda d, i: (d, 0, 0), **wkw),    # Whh
            pl.BlockSpec((None, 1, 4 * H), lambda d, i: (d, 0, 0)),           # bias
        ],
        out_specs=(
            pl.BlockSpec((None, Tc, Bp, H),                                   # y
                         lambda d, i: (d, i + d * (nc - 1 - 2 * i), 0, 0)),
            pl.BlockSpec((None, Bp, H), lambda d, i: (d, 0, 0)),              # h_N
            pl.BlockSpec((None, Bp, H), lambda d, i: (d, 0, 0)),              # c_N
        ),
        out_shape=(
            jax.ShapeDtypeStruct((2, T_pad, Bp, H), jnp.bfloat16),
            jax.ShapeDtypeStruct((2, Bp, H), jnp.float32),
            jax.ShapeDtypeStruct((2, Bp, H), jnp.float32),
        ),
        scratch_shapes=[pltpu.VMEM((Bp, H), jnp.float32),
                        pltpu.VMEM((Bp, H), jnp.float32)],
        compiler_params=pltpu.CompilerParams(
            dimension_semantics=("parallel", "arbitrary"),
            vmem_limit_bytes=_vmem_limit()),
    )(lens2d, p_gates, whh, bias)
    return y, hN, cN


# ----------------------------------------------------------------------------
# Kernel 3: split-K projection  out = y_f @ Wp_f + y_b @ Wp_b + b (+ tanh).
# The pad_packed unpad and [::sub] subsampling are folded into the BlockSpec:
# y is viewed as (2, T_pad//sub, sub, Bp, H) and only sub-index 0 of each group
# is fetched, and only ceil(Tmax/sub) output rows are produced.
# ----------------------------------------------------------------------------
def proj_kernel(y_ref, w_ref, b_ref, o_ref, *, apply_tanh):
    _, tb, bp, h = y_ref.shape
    yf = y_ref[0].reshape(tb * bp, h)
    yb = y_ref[1].reshape(tb * bp, h)
    out = jnp.dot(yf, w_ref[0], preferred_element_type=jnp.float32)
    out = out + jnp.dot(yb, w_ref[1], preferred_element_type=jnp.float32)
    out = out + b_ref[...]
    if apply_tanh:
        out = jnp.tanh(out)
    o_ref[...] = out.astype(o_ref.dtype)


def run_proj(y, wp, pb, Tmax, sub, Tc, apply_tanh, out_dtype):
    _, T_pad, Bp, H = y.shape
    hdim = wp.shape[-1]
    Tq = T_pad // sub                     # T_pad is a multiple of sub (Tc is)
    Tp = -(-Tmax // sub)                  # ceil(Tmax / sub): reference output len
    Tb = min(Tc // sub, Tp)               # output times per grid step
    y5 = y.reshape(2, Tq, sub, Bp, H)     # metadata-only view
    out = pl.pallas_call(
        functools.partial(proj_kernel, apply_tanh=apply_tanh),
        grid=(pl.cdiv(Tp, Tb),),
        in_specs=[pl.BlockSpec((2, Tb, None, Bp, H), lambda i: (0, i, 0, 0, 0)),
                  pl.BlockSpec((2, H, hdim), lambda i: (0, 0, 0),
                               **_weight_spec_kwargs()),
                  pl.BlockSpec((1, hdim), lambda i: (0, 0))],
        out_specs=pl.BlockSpec((Tb * Bp, hdim), lambda i: (i, 0)),
        out_shape=jax.ShapeDtypeStruct((Tp * Bp, hdim), out_dtype),
        compiler_params=pltpu.CompilerParams(
            dimension_semantics=("parallel",),
            vmem_limit_bytes=_vmem_limit()),
    )(y5, wp, pb)
    return out.reshape(Tp, Bp, hdim)


# ----------------------------------------------------------------------------
# Parameter init (deterministic, PyTorch-like uniform) and the layer loop
# ----------------------------------------------------------------------------
def init_params(key, idim, elayers, cdim, hdim):
    params = []
    H = cdim
    stdv = 1.0 / np.sqrt(cdim)
    for layer in range(elayers):
        din = idim if layer == 0 else hdim
        keys = jax.random.split(jax.random.fold_in(key, layer), 10)
        u = lambda k, shape: jax.random.uniform(k, shape, jnp.float32, -stdv, stdv)

        wih_f = u(keys[0], (din, 4 * H))          # stored transposed (x @ W^T)
        wih_b = u(keys[1], (din, 4 * H))
        whh_f = u(keys[2], (H, 4 * H))
        whh_b = u(keys[3], (H, 4 * H))
        b_f = u(keys[4], (1, 4 * H)) + u(keys[5], (1, 4 * H))   # b_ih + b_hh
        b_b = u(keys[6], (1, 4 * H)) + u(keys[7], (1, 4 * H))
        wp = u(keys[8], (2 * H, hdim))            # Linear(2*cdim, hdim) transposed
        pb = u(keys[9], (1, hdim))

        params.append({
            'wih': jnp.concatenate([wih_f, wih_b], 1).astype(jnp.bfloat16),  # (Din,8H)
            'whh': jnp.stack([whh_f, whh_b], 0).astype(jnp.bfloat16),        # (2,H,4H)
            'bias': jnp.stack([b_f, b_b], 0),                                # (2,1,4H) f32
            'wp': jnp.stack([wp[:H], wp[H:]], 0).astype(jnp.bfloat16),       # (2,H,hdim)
            'pb': pb,                                                        # (1,hdim) f32
        })
    return params


def rnnp_forward(params, xs_pad, ilens, subsample, elayers, cdim, hdim):
    """Eval-mode RNNP forward (blstm + per-layer projection + subsampling)."""
    assert cdim % 32 == 0, "cdim must be a multiple of 32 (>=128 recommended)"
    B = xs_pad.shape[0]
    Bp = _round_up(B, 8)                          # pad batch to the sublane count
    H = cdim

    x = jnp.transpose(jnp.asarray(xs_pad, jnp.float32), (1, 0, 2))   # (T, B, D)
    if Bp != B:
        x = jnp.pad(x, ((0, 0), (0, Bp - B), (0, 0)))

    lens = np.asarray(ilens, dtype=np.int64)
    lens_p = np.zeros((Bp,), np.int32)
    lens_p[:B] = lens
    elayer_states = []

    for layer in range(elayers):
        p = params[layer]
        sub = int(subsample[layer])
        Tmax = int(lens.max())                    # pad_packed_sequence length
        Tc = _round_up(min(64, Tmax), sub)        # time chunk; multiple of sub so
        T_pad = _round_up(Tmax, Tc)               # the projection folds subsampling

        x = x[:Tmax]
        if T_pad != Tmax:
            x = jnp.pad(x, ((0, T_pad - Tmax), (0, 0), (0, 0)))
        Din = x.shape[-1]
        lens2d = jnp.asarray(lens_p, jnp.int32)[:, None]

        # ---- hoisted input GEMM (all timesteps, both directions) ----
        pre = run_pregemm(x.reshape(T_pad * Bp, Din), p['wih'], H)
        pre = pre.reshape(2, T_pad, Bp, 4 * H)            # per-direction slabs

        # ---- time-chunked bidirectional recurrence ----
        y, hN, cN = run_bilstm(pre, lens2d, p['whh'], p['bias'], H, Tc)
        elayer_states.append((hN[:, :B], cN[:, :B]))      # (2, B, cdim) each

        # ---- projection (+ tanh; dropout identity in eval), subsample folded in
        if sub > 1:
            lens = (lens + 1) // sub
            lens_p = (lens_p + 1) // sub
        last = layer == elayers - 1
        x = run_proj(y, p['wp'], p['pb'], Tmax, sub, Tc,
                     apply_tanh=not last,
                     out_dtype=jnp.float32 if last else jnp.bfloat16)

    x = jnp.transpose(x, (1, 0, 2))[:B]           # back to batch-first
    return x, jnp.asarray(lens, jnp.int32), elayer_states


# ----------------------------------------------------------------------------
if __name__ == "__main__":
    B, Tmax, idim = 2, 8, 16
    elayers, cdim, hdim = 2, 32, 32
    subsample = [1, 2]
    ilens = [8, 6]                                # sorted descending

    key = jax.random.PRNGKey(0)
    kx, kp = jax.random.split(key)
    xs_pad = jax.random.normal(kx, (B, Tmax, idim), jnp.float32)
    # zero padded frames (a packed sequence never reads them)
    t_idx = jnp.arange(Tmax)[None, :, None]
    xs_pad = jnp.where(t_idx < jnp.asarray(ilens)[:, None, None], xs_pad, 0.0)

    params = init_params(kp, idim, elayers, cdim, hdim)

    out, out_lens, states = rnnp_forward(params, xs_pad, ilens, subsample,
                                         elayers, cdim, hdim)
    jax.block_until_ready(out)
    jax.block_until_ready(out_lens)
    for (h_n, c_n) in states:
        jax.block_until_ready(h_n)
        jax.block_until_ready(c_n)

    assert out.shape == (B, (max(ilens) + 1) // 2, hdim), out.shape
    assert all(int(l) == (o + 1) // 2 for l, o in zip(out_lens.tolist(), ilens))
    assert states[0][0].shape == (2, B, cdim)
    assert bool(jnp.all(jnp.isfinite(out)))
    print("KERNEL_OK")
</pallas_src>

<mosaic_0001>
module attributes {stable_mosaic.version = 11 : i64} {
  func.func @_probe_copy_kernel(%arg0: i32, %arg1: memref<8x128xf32, #tpu.memory_space<vmem>>, %arg2: memref<8x128xf32, #tpu.memory_space<vmem>>) attributes {dimension_semantics = [#tpu.dimension_semantics<arbitrary>], iteration_bounds = array<i64: 1>, scalar_prefetch = 0 : i64, scratch_operands = 0 : i64, tpu.core_type = #tpu.core_type<tc>, window_params = [{pipeline_mode = #tpu.pipeline_mode<synchronous>, transform_indices = @transform_0, window_bounds = array<i64: 8, 128>}, {pipeline_mode = #tpu.pipeline_mode<synchronous>, transform_indices = @transform_1, window_bounds = array<i64: 8, 128>}]} {
    %c0 = arith.constant 0 : index
    %c0_0 = arith.constant 0 : index
    %0 = vector.load %arg1[%c0, %c0_0] : memref<8x128xf32, #tpu.memory_space<vmem>>, vector<8x128xf32>
    %c0_1 = arith.constant 0 : index
    %c0_2 = arith.constant 0 : index
    %1 = vector.load %arg2[%c0_1, %c0_2] : memref<8x128xf32, #tpu.memory_space<vmem>>, vector<8x128xf32>
    tpu.vector_store %arg2[%c0_1, %c0_2], %0 {strides = array<i32>} : memref<8x128xf32, #tpu.memory_space<vmem>>, vector<8x128xf32>,
    return
  }
  func.func @transform_0(%arg0: i32) -> (i32, i32) {
    %c0_i32 = arith.constant 0 : i32
    %c0_i32_0 = arith.constant 0 : i32
    %c0_i32_1 = arith.constant 0 : i32
    return %c0_i32, %c0_i32_0 : i32, i32
  }
  func.func @transform_1(%arg0: i32) -> (i32, i32) {
    %c0_i32 = arith.constant 0 : i32
    %c0_i32_0 = arith.constant 0 : i32
    %c0_i32_1 = arith.constant 0 : i32
    return %c0_i32, %c0_i32_0 : i32, i32
  }
}

module attributes {stable_mosaic.version = 11 : i64} {
  func.func @pregemm_kernel(%arg0: i32, %arg1: memref<64x16xf32, #tpu.memory_space<vmem>>, %arg2: memref<16x256xbf16, #tpu.memory_space<vmem>>, %arg3: memref<2x64x128xbf16, #tpu.memory_space<vmem>>) attributes {dimension_semantics = [#tpu.dimension_semantics<parallel>], iteration_bounds = array<i64: 1>, scalar_prefetch = 0 : i64, scratch_operands = 0 : i64, tpu.core_type = #tpu.core_type<tc>, window_params = [{transform_indices = @transform_0, window_bounds = array<i64: 64, 16>}, {pipeline_mode = #tpu.pipeline_mode<synchronous>, transform_indices = @transform_1, window_bounds = array<i64: 16, 256>}, {transform_indices = @transform_2, window_bounds = array<i64: 2, 64, 128>}]} {
    %c0 = arith.constant 0 : index
    %c0_0 = arith.constant 0 : index
    %0 = vector.load %arg1[%c0, %c0_0] : memref<64x16xf32, #tpu.memory_space<vmem>>, vector<64x16xf32>
    %1 = arith.truncf %0 : vector<64x16xf32> to vector<64x16xbf16>
    %c0_1 = arith.constant 0 : index
    %c0_2 = arith.constant 0 : index
    %2 = vector.load %arg2[%c0_1, %c0_2] : memref<16x256xbf16, #tpu.memory_space<vmem>>, vector<16x256xbf16>
    %cst = arith.constant dense<0.000000e+00> : vector<64x256xf32>
    %3 = tpu.matmul %1, %2, %cst {dimension_numbers = #tpu.dot_dimension_numbers<[1], [0], [0], [1], [0, 0, 1, 1], [], []>} : vector<64x16xbf16>, vector<16x256xbf16>, vector<64x256xf32> -> vector<64x256xf32>
    %4 = vector.extract_strided_slice %3 {offsets = [0, 0], sizes = [64, 128], strides = [1, 1]} : vector<64x256xf32> to vector<64x128xf32>
    %5 = arith.truncf %4 : vector<64x128xf32> to vector<64x128xbf16>
    %c0_3 = arith.constant 0 : index
    %c0_4 = arith.constant 0 : index
    %c0_5 = arith.constant 0 : index
    %6 = vector.load %arg3[%c0_3, %c0_4, %c0_5] : memref<2x64x128xbf16, #tpu.memory_space<vmem>>, vector<1x64x128xbf16>
    %7 = vector.shape_cast %6 : vector<1x64x128xbf16> to vector<64x128xbf16>
    %8 = vector.shape_cast %5 : vector<64x128xbf16> to vector<1x64x128xbf16>
    tpu.vector_store %arg3[%c0_3, %c0_4, %c0_5], %8 {strides = array<i32>} : memref<2x64x128xbf16, #tpu.memory_space<vmem>>, vector<1x64x128xbf16>,
    %9 = vector.extract_strided_slice %3 {offsets = [0, 128], sizes = [64, 128], strides = [1, 1]} : vector<64x256xf32> to vector<64x128xf32>
    %10 = arith.truncf %9 : vector<64x128xf32> to vector<64x128xbf16>
    %c1 = arith.constant 1 : index
    %c0_6 = arith.constant 0 : index
    %c0_7 = arith.constant 0 : index
    %11 = vector.load %arg3[%c1, %c0_6, %c0_7] : memref<2x64x128xbf16, #tpu.memory_space<vmem>>, vector<1x64x128xbf16>
    %12 = vector.shape_cast %11 : vector<1x64x128xbf16> to vector<64x128xbf16>
    %13 = vector.shape_cast %10 : vector<64x128xbf16> to vector<1x64x128xbf16>
    tpu.vector_store %arg3[%c1, %c0_6, %c0_7], %13 {strides = array<i32>} : memref<2x64x128xbf16, #tpu.memory_space<vmem>>, vector<1x64x128xbf16>,
    return
  }
  func.func @transform_0(%arg0: i32) -> (i32, i32) {
    %c0_i32 = arith.constant 0 : i32
    %c0_i32_0 = arith.constant 0 : i32
    return %arg0, %c0_i32 : i32, i32
  }
  func.func @transform_1(%arg0: i32) -> (i32, i32) {
    %c0_i32 = arith.constant 0 : i32
    %c0_i32_0 = arith.constant 0 : i32
    %c0_i32_1 = arith.constant 0 : i32
    return %c0_i32, %c0_i32_0 : i32, i32
  }
  func.func @transform_2(%arg0: i32) -> (i32, i32, i32) {
    %c0_i32 = arith.constant 0 : i32
    %c0_i32_0 = arith.constant 0 : i32
    %c0_i32_1 = arith.constant 0 : i32
    return %c0_i32, %arg0, %c0_i32_0 : i32, i32, i32
  }
}

</mosaic_0001>

<llo_original>
// kernel: tpu_custom_call.1
$region0: #{tpu_custom_call.1}
  #allocation0 [shape = 'u32[]', space=smem, size = 0x4, offset = 0x4, fixed_abs, tag = 'smem constant byte address 0x4 - core index']
  #allocation1 [shape = 'u32[72,128]{1,0:T(1,128)}', space=vmem, size = 0x9000, scoped, tag = 'internal scratch']
  %s0 = inlined_call_operand.hbm [shape: f32[8,128], index: 0, kind: input, shape index: {}]
  %s1 = inlined_call_operand.hbm [shape: f32[8,128], index: 1, kind: output, shape index: {}]
  %s2 = sld [smem:[#allocation0]]
  $region18: #{tpu_custom_call.1} parent=0
    _
  %s4 = ssub.s32 1, %s2
  %s5 = scalar_select 0, %s4, %s2
  $region1: #{tpu_custom_call.1} parent=0
    #allocation2 [shape = 'u8[4096]{0}', space=vmem, size = 0x1000, scoped, tag = 'input window, operand 0, single buffered']
    #allocation3 [shape = 's32[1]{0}', space=sflag, size = 0x4, scoped, tag = 'scoped memory for tpu_custom_call.1']
    #allocation4 [shape = 's32[1]{0}', space=sflag, size = 0x4, scoped, tag = 'scoped memory for tpu_custom_call.1']
    #allocation5 [shape = 'u8[4096]{0}', space=vmem, size = 0x1000, scoped, tag = 'output window, operand 0, single buffered']
    %6 = vsyncpa [#allocation3], 0
    %7 = vsyncpa [#allocation4], 0
    // Predicated region
    $region2: #{tpu_custom_call.1} parent=1 // pred_check
      _
    $region3: #{tpu_custom_call.1} parent=1 // pred_check_branch
      %9 = sbr.rel (0) target = $region5
    $region4: #{tpu_custom_call.1} parent=1 // pred_region
      %11 = vsyncadd [#allocation3], 0
      %s13 = sshll.u32 %s0, 4
      %s14 = int_to_ptr.hbm [resolvable:$true] %s13
      %s15 = sshll.u32 [#allocation2], 4
      %s16 = int_to_ptr.vmem [resolvable:$true] %s15
      %18 = dma.hbm_to_vmem [thread:$0]  %s14, 128, %s16, [#allocation3]
    $region5: #{tpu_custom_call.1} parent=1 // pred_fallthru
      _
    // Predicated region
    $region6: #{tpu_custom_call.1} parent=1 // pred_check
      _
    $region7: #{tpu_custom_call.1} parent=1 // pred_check_branch
      %20 = sbr.rel (0) target = $region9
    $region8: #{tpu_custom_call.1} parent=1 // pred_region
      %22 = dma.done [#allocation3], 128
    $region9: #{tpu_custom_call.1} parent=1 // pred_fallthru
      _
    %v23 = vld [vmem:[#allocation2] sm:$0xff]
    %24 = vst [vmem:[#allocation5] sm:$0xff] %v23
    // Predicated region
    $region10: #{tpu_custom_call.1} parent=1 // pred_check
      _
    $region11: #{tpu_custom_call.1} parent=1 // pred_check_branch
      %26 = sbr.rel (0) target = $region13
    $region12: #{tpu_custom_call.1} parent=1 // pred_region
      %28 = vsyncadd [#allocation4], 0
      %s30 = sshll.u32 [#allocation5], 4
      %s31 = int_to_ptr.vmem [resolvable:$true] %s30
      %s32 = sshll.u32 %s1, 4
      %s33 = int_to_ptr.hbm [resolvable:$true] %s32
      %35 = dma.vmem_to_hbm [thread:$0]  %s31, 128, %s33, [#allocation4]
    $region13: #{tpu_custom_call.1} parent=1 // pred_fallthru
      _
    // Predicated region
    $region14: #{tpu_custom_call.1} parent=1 // pred_check
      _
    $region15: #{tpu_custom_call.1} parent=1 // pred_check_branch
      %37 = sbr.rel (0) target = $region17
    $region16: #{tpu_custom_call.1} parent=1 // pred_region
      %39 = dma.done [#allocation4], 128
    $region17: #{tpu_custom_call.1} parent=1 // pred_fallthru
      _
    %40 = vsyncpa [#allocation3], 1
    %41 = vsyncpa [#allocation4], 1

// kernel: tpu_custom_call.1
$region0: #{tpu_custom_call.1}
  #allocation0 [shape = 'u32[]', space=smem, size = 0x4, offset = 0x4, fixed_abs, tag = 'smem constant byte address 0x4 - core index']
  #allocation1 [shape = 'u32[72,128]{1,0:T(1,128)}', space=vmem, size = 0x9000, scoped, tag = 'internal scratch']
  %s0 = inlined_call_operand.vmem [shape: f32[64,16], index: 0, kind: input, shape index: {}]
  %s1 = inlined_call_operand.vmem [shape: bf16[16,256], index: 1, kind: input, shape index: {}]
  %s2 = inlined_call_operand.hbm [shape: bf16[2,64,128], index: 2, kind: output, shape index: {}]
  %s3 = sld [smem:[#allocation0]]
  $region18: #{tpu_custom_call.1} parent=0
    _
  %s5 = ssub.s32 1, %s3
  %s6 = scalar_select 0, %s5, %s3
  $region1: #{tpu_custom_call.1} parent=0
    #allocation2 [shape = 'u8[32768]{0}', space=vmem, size = 0x8000, scoped, tag = 'output window, operand 0, single buffered']
    #allocation3 [shape = 's32[1]{0}', space=sflag, size = 0x4, scoped, tag = 'scoped memory for tpu_custom_call.1']
    %7 = vsyncpa [#allocation3], 0
    // Predicated region
    $region2: #{tpu_custom_call.1} parent=1 // pred_check
      _
    $region3: #{tpu_custom_call.1} parent=1 // pred_check_branch
      %9 = sbr.rel (0) target = $region5
    $region4: #{tpu_custom_call.1} parent=1 // pred_region
      _
    $region5: #{tpu_custom_call.1} parent=1 // pred_fallthru
      _
    // Predicated region
    $region6: #{tpu_custom_call.1} parent=1 // pred_check
      _
    $region7: #{tpu_custom_call.1} parent=1 // pred_check_branch
      %11 = sbr.rel (0) target = $region9
    $region8: #{tpu_custom_call.1} parent=1 // pred_region
      _
    $region9: #{tpu_custom_call.1} parent=1 // pred_fallthru
      _
    %v13 = vld [vmem:[%s0] sm:$0xff]
    %v14 = vld [vmem:[%s0 + $0x8] sm:$0xff]
    %v15 = vld [vmem:[%s0 + $0x10] sm:$0xff]
    %v16 = vld [vmem:[%s0 + $0x18] sm:$0xff]
    %v17 = vld [vmem:[%s0 + $0x20] sm:$0xff]
    %v18 = vld [vmem:[%s0 + $0x28] sm:$0xff]
    %v19 = vld [vmem:[%s0 + $0x30] sm:$0xff]
    %v20 = vld [vmem:[%s0 + $0x38] sm:$0xff]
    %v21 = vpack.c.bf16 %v14, %v13
    %v22 = vpack.c.bf16 %v16, %v15
    %v23 = vpack.c.bf16 %v18, %v17
    %v24 = vpack.c.bf16 %v20, %v19
    %v25 = vld [vmem:[%s1] sm:$0xff]
    %v26 = vld [vmem:[%s1 + $0x8] sm:$0xff]
    %v29 = vunpack.c.l.b16 %v25
    %v30 = vunpack.c.h.b16 %v25
    %v31 = vunpack.c.l.b16 %v26
    %v32 = vunpack.c.h.b16 %v26
    %v33 = vpack.c.b16 %v31, %v29
    %v34 = vpack.c.b16 %v32, %v30
    %vm37 = vcmask 130048
    %v39 = vsel %vm37, %v21, 0
    %v42 = vsel %vm37, %v22, 0
    %v45 = vsel %vm37, %v23, 0
    %v48 = vsel %vm37, %v24, 0
    %50 = vmatpush.bf16.msra.mxu0 0
    %51 = vmatpush.bf16.msra.mxu0 0
    %52 = vmatpush.bf16.msra.mxu0 0
    %53 = vmatpush.bf16.msra.mxu0 0
    %54 = vmatpush.bf16.msra.mxu0 0
    %55 = vmatpush.bf16.msra.mxu0 0
    %56 = vmatpush.bf16.msra.mxu0 0
    %57 = vmatpush.bf16.msra.mxu0 %v33
    %58 = vmatmul.bf16.gmra.mxu0 %v39
    %v59 = vpop.f32.mrf.mxu0
    %v60 = vadd.f32 0.0, %v59
    %v61 = vpop.f32.mrf.mxu0
    %v62 = vadd.f32 0.0, %v61
    %63 = vmatmul.bf16.gmra.mxu0 %v42
    %v64 = vpop.f32.mrf.mxu0
    %v65 = vadd.f32 0.0, %v64
    %v66 = vpop.f32.mrf.mxu0
    %v67 = vadd.f32 0.0, %v66
    %68 = vmatmul.bf16.gmra.mxu0 %v45
    %v69 = vpop.f32.mrf.mxu0
    %v70 = vadd.f32 0.0, %v69
    %v71 = vpop.f32.mrf.mxu0
    %v72 = vadd.f32 0.0, %v71
    %73 = vmatmul.bf16.gmra.mxu0 %v48
    %v74 = vpop.f32.mrf.mxu0
    %v75 = vadd.f32 0.0, %v74
    %v76 = vpop.f32.mrf.mxu0
    %v77 = vadd.f32 0.0, %v76
    %78 = vdwg.mxu0
    %79 = vmatpush.bf16.msra.mxu0 0
    %80 = vmatpush.bf16.msra.mxu0 0
    %81 = vmatpush.bf16.msra.mxu0 0
    %82 = vmatpush.bf16.msra.mxu0 0
    %83 = vmatpush.bf16.msra.mxu0 0
    %84 = vmatpush.bf16.msra.mxu0 0
    %85 = vmatpush.bf16.msra.mxu0 0
    %86 = vmatpush.bf16.msra.mxu0 %v34
    %87 = vmatmul.bf16.gmra.mxu0 %v39
    %v88 = vpop.f32.mrf.mxu0
    %v89 = vadd.f32 0.0, %v88
    %v90 = vpop.f32.mrf.mxu0
    %v91 = vadd.f32 0.0, %v90
    %92 = vmatmul.bf16.gmra.mxu0 %v42
    %v93 = vpop.f32.mrf.mxu0
    %v94 = vadd.f32 0.0, %v93
    %v95 = vpop.f32.mrf.mxu0
    %v96 = vadd.f32 0.0, %v95
    %97 = vmatmul.bf16.gmra.mxu0 %v45
    %v98 = vpop.f32.mrf.mxu0
    %v99 = vadd.f32 0.0, %v98
    %v100 = vpop.f32.mrf.mxu0
    %v101 = vadd.f32 0.0, %v100
    %102 = vmatmul.bf16.gmra.mxu0 %v48
    %v103 = vpop.f32.mrf.mxu0
    %v104 = vadd.f32 0.0, %v103
    %v105 = vpop.f32.mrf.mxu0
    %v106 = vadd.f32 0.0, %v105
    %107 = vdwg.mxu0
    %v108 = vpack.c.bf16 %v60, %v60
    %v109 = vpack.c.bf16 %v62, %v62
    %v110 = vpack.c.bf16 %v65, %v65
    %v111 = vpack.c.bf16 %v67, %v67
    %v112 = vpack.c.bf16 %v70, %v70
    %v113 = vpack.c.bf16 %v72, %v72
    %v114 = vpack.c.bf16 %v75, %v75
    %v115 = vpack.c.bf16 %v77, %v77
    %116 = vst [vmem:[#allocation2] sm:$0xf] %v108
    %117 = vst [vmem:[#allocation2 + $0x4] sm:$0xf] %v109
    %118 = vst [vmem:[#allocation2 + $0x8] sm:$0xf] %v110
    %119 = vst [vmem:[#allocation2 + $0xc] sm:$0xf] %v111
    %120 = vst [vmem:[#allocation2 + $0x10] sm:$0xf] %v112
    %121 = vst [vmem:[#allocation2 + $0x14] sm:$0xf] %v113
    %122 = vst [vmem:[#allocation2 + $0x18] sm:$0xf] %v114
    %123 = vst [vmem:[#allocation2 + $0x1c] sm:$0xf] %v115
    %v124 = vpack.c.bf16 %v89, %v89
    %v125 = vpack.c.bf16 %v91, %v91
    %v126 = vpack.c.bf16 %v94, %v94
    %v127 = vpack.c.bf16 %v96, %v96
    %v128 = vpack.c.bf16 %v99, %v99
    %v129 = vpack.c.bf16 %v101, %v101
    %v130 = vpack.c.bf16 %v104, %v104
    %v131 = vpack.c.bf16 %v106, %v106
    %s132 = scalar_lea.vmem [#allocation2], 32
    %133 = vst [vmem:[%s132] sm:$0xf] %v124
    %134 = vst [vmem:[%s132 + $0x4] sm:$0xf] %v125
    %135 = vst [vmem:[%s132 + $0x8] sm:$0xf] %v126
    %136 = vst [vmem:[%s132 + $0xc] sm:$0xf] %v127
    %137 = vst [vmem:[%s132 + $0x10] sm:$0xf] %v128
    %138 = vst [vmem:[%s132 + $0x14] sm:$0xf] %v129
    %139 = vst [vmem:[%s132 + $0x18] sm:$0xf] %v130
    %140 = vst [vmem:[%s132 + $0x1c] sm:$0xf] %v131
    // Predicated region
    $region10: #{tpu_custom_call.1} parent=1 // pred_check
      _
    $region11: #{tpu_custom_call.1} parent=1 // pred_check_branch
      %142 = sbr.rel (0) target = $region13
    $region12: #{tpu_custom_call.1} parent=1 // pred_region
      %144 = vsyncadd [#allocation3], 0
      %s145 = sshll.u32 [#allocation2], 4
      %s146 = int_to_ptr.vmem [resolvable:$true] %s145
      %s147 = sshll.u32 %s2, 4
      %s148 = int_to_ptr.hbm [resolvable:$true] %s147
      %153 = dma.vmem_to_hbm [thread:$0]  %s146, 1024, %s148, [#allocation3], 64, 64, 4
    $region13: #{tpu_custom_call.1} parent=1 // pred_fallthru
      _
    // Predicated region
    $region14: #{tpu_custom_call.1} parent=1 // pred_check
      _
    $region15: #{tpu_custom_call.1} parent=1 // pred_check_branch
      %155 = sbr.rel (0) target = $region17
    $region16: #{tpu_custom_call.1} parent=1 // pred_region
      %157 = dma.done [#allocation3], 1024
    $region17: #{tpu_custom_call.1} parent=1 // pred_fallthru
      _
    %158 = vsyncpa [#allocation3], 1

</llo_original>
